<compile_context>
chip_gen: v7x
topology: tpu7x:2x2x1
jax: 0.10.0
libtpu: 0.0.40
codegen_flags: <defaults>
</compile_context>

<pallas_src>
import jax
import jax.numpy as jnp
from jax import lax
from jax.experimental import pallas as pl
from jax.experimental.pallas import tpu as pltpu


def _ssm_kernel(x_ref, at_ref, bt_ref, ctp_ref, y_ref, h_carry_ref):
    # x_ref      : (TB, TN, C_in)  native-layout input block (TN time steps)
    # at_ref     : (H, H)          A_norm.T
    # bt_ref     : (C_in, H)       B.T
    # ctp_ref    : (H, OP)         C.T zero-padded to OP (=128k) lanes
    # y_ref      : (TB, TN, OP)    lane-dense padded output block
    # h_carry_ref: (TB, H)         VMEM scratch carrying h across time blocks
    t_blk = pl.program_id(1)                 # time axis is grid axis 1 (innermost)

    TB, TN, C_in = x_ref.shape
    H = at_ref.shape[0]
    OP = ctp_ref.shape[1]

    # First time block of each batch block: seed h_0 = 0.
    @pl.when(t_blk == 0)
    def _():
        h_carry_ref[...] = jnp.zeros_like(h_carry_ref)

    h = h_carry_ref[...]                     # (TB, H) carry from previous block

    # Hoisted input projection for the whole block: one dense matmul instead
    # of TN tiny ones on the serial path.  Reshapes only collapse/split
    # leading dims -> layout preserving.
    u_all = jnp.dot(
        x_ref[...].reshape(TB * TN, C_in),
        bt_ref[...],
        preferred_element_type=jnp.float32,
    ).reshape(TB, TN, H)
    # NOTE: a (TN, TB, H) layout would make the per-step u read a leading-dim
    # slice; kept b-major so x stays in its native (B, N, C_in) HBM layout and
    # the batch-parallel blocking stays on the (unconstrained) leading dim.

    at = at_ref[...]
    ct = ctp_ref[...]

    # Serial recurrence, statically unrolled.  Hidden states of each SUB-step
    # chunk stay in vregs; once per chunk they are stacked into a
    # sublane-aligned slab, projected through C^T, and stored lane-dense.
    SUB = 8
    for base in range(0, TN, SUB):
        n_sub = min(SUB, TN - base)
        h_chunk = []
        for s in range(n_sub):
            u_t = u_all[:, base + s, :]                       # (TB, H)
            h = jnp.maximum(
                jnp.dot(h, at, preferred_element_type=jnp.float32) + u_t,
                0.0,
            )
            h_chunk.append(h)
        hs = jnp.stack(h_chunk, axis=1)                       # (TB, n_sub, H)
        y_ref[:, base:base + n_sub, :] = jnp.dot(
            hs.reshape(TB * n_sub, H),
            ct,
            preferred_element_type=jnp.float32,
        ).reshape(TB, n_sub, OP).astype(y_ref.dtype)

    # Carry h into the next time block of this batch block.
    h_carry_ref[...] = h


def make_ssm_params(A, Bmat, Cmat, *, lane_pad=128):
    """One-time parameter prep (cache this when A/B/C are static between calls).

    Computes the exact spectral-norm normalization of A (matches
    torch.linalg.norm(A, ord=2)), pre-transposes the weights, and zero-pads
    C^T to a lane-dense width so the kernel's output stores are unmasked.
    """
    H = A.shape[0]
    O = Cmat.shape[0]
    spec = jnp.linalg.norm(A, ord=2)          # exact (SVD); outside the kernel
    A_norm = A / (spec + 1e-5)
    OP = ((O + lane_pad - 1) // lane_pad) * lane_pad
    CT_pad = jnp.zeros((H, OP), dtype=Cmat.dtype).at[:, :O].set(Cmat.T)
    return A_norm.T, Bmat.T, CT_pad, O        # (H,H), (C_in,H), (H,OP), O


def ssm_core_forward(x, params, *, block_n=None, num_batch_blocks=None):
    """x: (B, N, C_in) float32 -> y: (B, N, O) float32."""
    AT, BT, CTP, O = params
    Bsz, N, C_in = x.shape
    H = AT.shape[0]
    OP = CTP.shape[1]

    # ---- chip-aware tiling -------------------------------------------------
    try:
        vmem_cap = int(pltpu.get_tpu_info().vmem_capacity_bytes)
    except Exception:
        vmem_cap = 64 * 2 ** 20               # v7x per-TC VMEM (smallest case)

    if num_batch_blocks is None:
        # Independent-per-batch "parallel" axis: lets v7x's 2 TensorCores split
        # the batch; near-neutral (pure loop) on single-core v5e/v6e.
        num_batch_blocks = 2 if (Bsz % 2 == 0 and Bsz > 1) else 1
    assert Bsz % num_batch_blocks == 0
    TB = Bsz // num_batch_blocks

    def blk_bytes(tn):
        f32 = 4
        return (2 * TB * tn * C_in * f32              # x block, double-buffered
                + 2 * TB * tn * OP * f32              # y block, double-buffered
                + TB * tn * H * f32                   # u_all temp (compiler-managed)
                + TB * H * f32                        # h carry scratch
                + 2 * (H * H + C_in * H + H * OP) * f32)   # resident weights

    if block_n is None:
        budget = vmem_cap // 2
        block_n = N
        for cand in range(N, 0, -1):
            if N % cand == 0 and (cand == N or cand % 8 == 0):
                block_n = cand
                if blk_bytes(cand) <= budget:
                    break
    # BlockSpec (8,128) rule: time block must be a multiple of 8 or the full N.
    assert N % block_n == 0 and (block_n == N or block_n % 8 == 0)
    n_time_blocks = N // block_n

    vmem_limit = int(min(vmem_cap, max(4 * blk_bytes(block_n), 32 * 2 ** 20)))

    # NOTE: the h carry in scratch is only valid because the time axis is the
    # innermost grid axis and marked "arbitrary" (sequential per core).  Do not
    # reorder the grid or mark it "parallel".
    y_pad = pl.pallas_call(
        _ssm_kernel,
        out_shape=jax.ShapeDtypeStruct((Bsz, N, OP), x.dtype),
        grid_spec=pltpu.PrefetchScalarGridSpec(
            num_scalar_prefetch=0,
            grid=(num_batch_blocks, n_time_blocks),
            in_specs=[
                # native (B, N, C_in) layout: no wrapper transpose / HBM round trip
                pl.BlockSpec((TB, block_n, C_in), lambda b, t: (b, t, 0)),
                pl.BlockSpec((H, H), lambda b, t: (0, 0)),
                pl.BlockSpec((C_in, H), lambda b, t: (0, 0)),
                pl.BlockSpec((H, OP), lambda b, t: (0, 0)),
            ],
            out_specs=pl.BlockSpec((TB, block_n, OP), lambda b, t: (b, t, 0)),
            scratch_shapes=[pltpu.VMEM((TB, H), jnp.float32)],
        ),
        compiler_params=pltpu.CompilerParams(
            dimension_semantics=("parallel", "arbitrary"),
            vmem_limit_bytes=vmem_limit,
        ),
    )(x, AT, BT, CTP)

    # Drop the lane padding (lane-dense store in the kernel, slice here).
    return y_pad[:, :, :O]


def _reference_forward(x, A, Bmat, Cmat):
    """Pure-JAX reference matching the PyTorch loop semantics."""
    Bsz, N, C_in = x.shape
    H = A.shape[0]
    A_norm = A / (jnp.linalg.norm(A, ord=2) + 1e-5)

    def step(h, u_t):
        h = jax.nn.relu(h @ A_norm.T + u_t @ Bmat.T)
        y_t = h @ Cmat.T
        return h, y_t

    h0 = jnp.zeros((Bsz, H), dtype=x.dtype)
    _, ys = lax.scan(step, h0, jnp.transpose(x, (1, 0, 2)))
    return jnp.transpose(ys, (1, 0, 2))


if __name__ == "__main__":
    # Small shapes consistent with the module's forward.
    batch = 2
    seq_len = 8       # N
    input_dim = 4     # C_in
    hidden_dim = 32   # H
    output_dim = 8    # O

    key = jax.random.PRNGKey(0)
    kA, kB, kC, kx = jax.random.split(key, 4)

    # Deterministic parameter init (same shapes as nn.Parameter in __init__).
    A = jnp.eye(hidden_dim, dtype=jnp.float32) + 0.01 * jax.random.normal(
        kA, (hidden_dim, hidden_dim), dtype=jnp.float32)
    Bmat = 0.01 * jax.random.normal(kB, (hidden_dim, input_dim), dtype=jnp.float32)
    Cmat = 0.01 * jax.random.normal(kC, (output_dim, hidden_dim), dtype=jnp.float32)
    Lambda = jnp.ones((hidden_dim,), dtype=jnp.float32) * 0.5  # unused in forward

    x = jax.random.normal(kx, (batch, seq_len, input_dim), dtype=jnp.float32)

    params = make_ssm_params(A, Bmat, Cmat)   # one-time (cacheable) prep
    y = ssm_core_forward(x, params)
    y = jax.block_until_ready(y)

    y_ref = jax.block_until_ready(_reference_forward(x, A, Bmat, Cmat))
    assert y.shape == (batch, seq_len, output_dim)
    assert jnp.allclose(y, y_ref, atol=1e-5, rtol=1e-5)

    print("KERNEL_OK")
</pallas_src>

<mosaic_0001>
module attributes {stable_mosaic.version = 11 : i64} {
  func.func @_ssm_kernel(%arg0: i32, %arg1: i32, %arg2: memref<1x8x4xf32, #tpu.memory_space<vmem>>, %arg3: memref<32x32xf32, #tpu.memory_space<vmem>>, %arg4: memref<4x32xf32, #tpu.memory_space<vmem>>, %arg5: memref<32x128xf32, #tpu.memory_space<vmem>>, %arg6: memref<1x8x128xf32, #tpu.memory_space<vmem>>, %arg7: memref<1x32xf32, #tpu.memory_space<vmem>>) attributes {dimension_semantics = [#tpu.dimension_semantics<parallel>, #tpu.dimension_semantics<arbitrary>], iteration_bounds = array<i64: 2, 1>, scalar_prefetch = 0 : i64, scratch_operands = 1 : i64, tpu.core_type = #tpu.core_type<tc>, window_params = [{transform_indices = @transform_0, window_bounds = array<i64: 1, 8, 4>}, {pipeline_mode = #tpu.pipeline_mode<synchronous>, transform_indices = @transform_1, window_bounds = array<i64: 32, 32>}, {pipeline_mode = #tpu.pipeline_mode<synchronous>, transform_indices = @transform_2, window_bounds = array<i64: 4, 32>}, {pipeline_mode = #tpu.pipeline_mode<synchronous>, transform_indices = @transform_3, window_bounds = array<i64: 32, 128>}, {transform_indices = @transform_4, window_bounds = array<i64: 1, 8, 128>}]} {
    %c0_i32 = arith.constant 0 : i32
    %0 = arith.cmpi eq, %arg1, %c0_i32 : i32
    %1 = arith.extui %0 : i1 to i32
    %c0_i32_0 = arith.constant 0 : i32
    %2 = arith.cmpi ne, %1, %c0_i32_0 : i32
    scf.if %2 {
      %cst_33 = arith.constant 0.000000e+00 : f32
      %73 = vector.broadcast %cst_33 : f32 to vector<1x32xf32>
      %c0_34 = arith.constant 0 : index
      %c0_35 = arith.constant 0 : index
      %74 = vector.load %arg7[%c0_34, %c0_35] : memref<1x32xf32, #tpu.memory_space<vmem>>, vector<1x32xf32>
      tpu.vector_store %arg7[%c0_34, %c0_35], %73 {strides = array<i32>} : memref<1x32xf32, #tpu.memory_space<vmem>>, vector<1x32xf32>,
    } else {
    }
    %c0 = arith.constant 0 : index
    %c0_1 = arith.constant 0 : index
    %3 = vector.load %arg7[%c0, %c0_1] : memref<1x32xf32, #tpu.memory_space<vmem>>, vector<1x32xf32>
    %c0_2 = arith.constant 0 : index
    %c0_3 = arith.constant 0 : index
    %c0_4 = arith.constant 0 : index
    %4 = vector.load %arg2[%c0_2, %c0_3, %c0_4] : memref<1x8x4xf32, #tpu.memory_space<vmem>>, vector<1x8x4xf32>
    %5 = vector.shape_cast %4 : vector<1x8x4xf32> to vector<8x4xf32>
    %c0_5 = arith.constant 0 : index
    %c0_6 = arith.constant 0 : index
    %6 = vector.load %arg4[%c0_5, %c0_6] : memref<4x32xf32, #tpu.memory_space<vmem>>, vector<4x32xf32>
    %cst = arith.constant dense<0.000000e+00> : vector<8x32xf32>
    %7 = tpu.matmul %5, %6, %cst {dimension_numbers = #tpu.dot_dimension_numbers<[1], [0], [0], [1], [0, 0, 1, 1], [], []>} : vector<8x4xf32>, vector<4x32xf32>, vector<8x32xf32> -> vector<8x32xf32>
    %8 = vector.shape_cast %7 : vector<8x32xf32> to vector<1x8x32xf32>
    %c0_7 = arith.constant 0 : index
    %c0_8 = arith.constant 0 : index
    %9 = vector.load %arg3[%c0_7, %c0_8] : memref<32x32xf32, #tpu.memory_space<vmem>>, vector<32x32xf32>
    %c0_9 = arith.constant 0 : index
    %c0_10 = arith.constant 0 : index
    %10 = vector.load %arg5[%c0_9, %c0_10] : memref<32x128xf32, #tpu.memory_space<vmem>>, vector<32x128xf32>
    %11 = vector.extract_strided_slice %8 {offsets = [0, 0, 0], sizes = [1, 1, 32], strides = [1, 1, 1]} : vector<1x8x32xf32> to vector<1x1x32xf32>
    %12 = vector.shape_cast %11 : vector<1x1x32xf32> to vector<1x32xf32>
    %cst_11 = arith.constant dense<0.000000e+00> : vector<1x32xf32>
    %13 = tpu.matmul %3, %9, %cst_11 {dimension_numbers = #tpu.dot_dimension_numbers<[1], [0], [0], [1], [0, 0, 1, 1], [], []>} : vector<1x32xf32>, vector<32x32xf32>, vector<1x32xf32> -> vector<1x32xf32>
    %14 = arith.addf %13, %12 : vector<1x32xf32>
    %cst_12 = arith.constant 0.000000e+00 : f32
    %15 = vector.broadcast %cst_12 : f32 to vector<1x32xf32>
    %16 = arith.maximumf %14, %15 : vector<1x32xf32>
    %17 = vector.extract_strided_slice %8 {offsets = [0, 1, 0], sizes = [1, 1, 32], strides = [1, 1, 1]} : vector<1x8x32xf32> to vector<1x1x32xf32>
    %18 = vector.shape_cast %17 : vector<1x1x32xf32> to vector<1x32xf32>
    %cst_13 = arith.constant dense<0.000000e+00> : vector<1x32xf32>
    %19 = tpu.matmul %16, %9, %cst_13 {dimension_numbers = #tpu.dot_dimension_numbers<[1], [0], [0], [1], [0, 0, 1, 1], [], []>} : vector<1x32xf32>, vector<32x32xf32>, vector<1x32xf32> -> vector<1x32xf32>
    %20 = arith.addf %19, %18 : vector<1x32xf32>
    %cst_14 = arith.constant 0.000000e+00 : f32
    %21 = vector.broadcast %cst_14 : f32 to vector<1x32xf32>
    %22 = arith.maximumf %20, %21 : vector<1x32xf32>
    %23 = vector.extract_strided_slice %8 {offsets = [0, 2, 0], sizes = [1, 1, 32], strides = [1, 1, 1]} : vector<1x8x32xf32> to vector<1x1x32xf32>
    %24 = vector.shape_cast %23 : vector<1x1x32xf32> to vector<1x32xf32>
    %cst_15 = arith.constant dense<0.000000e+00> : vector<1x32xf32>
    %25 = tpu.matmul %22, %9, %cst_15 {dimension_numbers = #tpu.dot_dimension_numbers<[1], [0], [0], [1], [0, 0, 1, 1], [], []>} : vector<1x32xf32>, vector<32x32xf32>, vector<1x32xf32> -> vector<1x32xf32>
    %26 = arith.addf %25, %24 : vector<1x32xf32>
    %cst_16 = arith.constant 0.000000e+00 : f32
    %27 = vector.broadcast %cst_16 : f32 to vector<1x32xf32>
    %28 = arith.maximumf %26, %27 : vector<1x32xf32>
    %29 = vector.extract_strided_slice %8 {offsets = [0, 3, 0], sizes = [1, 1, 32], strides = [1, 1, 1]} : vector<1x8x32xf32> to vector<1x1x32xf32>
    %30 = vector.shape_cast %29 : vector<1x1x32xf32> to vector<1x32xf32>
    %cst_17 = arith.constant dense<0.000000e+00> : vector<1x32xf32>
    %31 = tpu.matmul %28, %9, %cst_17 {dimension_numbers = #tpu.dot_dimension_numbers<[1], [0], [0], [1], [0, 0, 1, 1], [], []>} : vector<1x32xf32>, vector<32x32xf32>, vector<1x32xf32> -> vector<1x32xf32>
    %32 = arith.addf %31, %30 : vector<1x32xf32>
    %cst_18 = arith.constant 0.000000e+00 : f32
    %33 = vector.broadcast %cst_18 : f32 to vector<1x32xf32>
    %34 = arith.maximumf %32, %33 : vector<1x32xf32>
    %35 = vector.extract_strided_slice %8 {offsets = [0, 4, 0], sizes = [1, 1, 32], strides = [1, 1, 1]} : vector<1x8x32xf32> to vector<1x1x32xf32>
    %36 = vector.shape_cast %35 : vector<1x1x32xf32> to vector<1x32xf32>
    %cst_19 = arith.constant dense<0.000000e+00> : vector<1x32xf32>
    %37 = tpu.matmul %34, %9, %cst_19 {dimension_numbers = #tpu.dot_dimension_numbers<[1], [0], [0], [1], [0, 0, 1, 1], [], []>} : vector<1x32xf32>, vector<32x32xf32>, vector<1x32xf32> -> vector<1x32xf32>
    %38 = arith.addf %37, %36 : vector<1x32xf32>
    %cst_20 = arith.constant 0.000000e+00 : f32
    %39 = vector.broadcast %cst_20 : f32 to vector<1x32xf32>
    %40 = arith.maximumf %38, %39 : vector<1x32xf32>
    %41 = vector.extract_strided_slice %8 {offsets = [0, 5, 0], sizes = [1, 1, 32], strides = [1, 1, 1]} : vector<1x8x32xf32> to vector<1x1x32xf32>
    %42 = vector.shape_cast %41 : vector<1x1x32xf32> to vector<1x32xf32>
    %cst_21 = arith.constant dense<0.000000e+00> : vector<1x32xf32>
    %43 = tpu.matmul %40, %9, %cst_21 {dimension_numbers = #tpu.dot_dimension_numbers<[1], [0], [0], [1], [0, 0, 1, 1], [], []>} : vector<1x32xf32>, vector<32x32xf32>, vector<1x32xf32> -> vector<1x32xf32>
    %44 = arith.addf %43, %42 : vector<1x32xf32>
    %cst_22 = arith.constant 0.000000e+00 : f32
    %45 = vector.broadcast %cst_22 : f32 to vector<1x32xf32>
    %46 = arith.maximumf %44, %45 : vector<1x32xf32>
    %47 = vector.extract_strided_slice %8 {offsets = [0, 6, 0], sizes = [1, 1, 32], strides = [1, 1, 1]} : vector<1x8x32xf32> to vector<1x1x32xf32>
    %48 = vector.shape_cast %47 : vector<1x1x32xf32> to vector<1x32xf32>
    %cst_23 = arith.constant dense<0.000000e+00> : vector<1x32xf32>
    %49 = tpu.matmul %46, %9, %cst_23 {dimension_numbers = #tpu.dot_dimension_numbers<[1], [0], [0], [1], [0, 0, 1, 1], [], []>} : vector<1x32xf32>, vector<32x32xf32>, vector<1x32xf32> -> vector<1x32xf32>
    %50 = arith.addf %49, %48 : vector<1x32xf32>
    %cst_24 = arith.constant 0.000000e+00 : f32
    %51 = vector.broadcast %cst_24 : f32 to vector<1x32xf32>
    %52 = arith.maximumf %50, %51 : vector<1x32xf32>
    %53 = vector.extract_strided_slice %8 {offsets = [0, 7, 0], sizes = [1, 1, 32], strides = [1, 1, 1]} : vector<1x8x32xf32> to vector<1x1x32xf32>
    %54 = vector.shape_cast %53 : vector<1x1x32xf32> to vector<1x32xf32>
    %cst_25 = arith.constant dense<0.000000e+00> : vector<1x32xf32>
    %55 = tpu.matmul %52, %9, %cst_25 {dimension_numbers = #tpu.dot_dimension_numbers<[1], [0], [0], [1], [0, 0, 1, 1], [], []>} : vector<1x32xf32>, vector<32x32xf32>, vector<1x32xf32> -> vector<1x32xf32>
    %56 = arith.addf %55, %54 : vector<1x32xf32>
    %cst_26 = arith.constant 0.000000e+00 : f32
    %57 = vector.broadcast %cst_26 : f32 to vector<1x32xf32>
    %58 = arith.maximumf %56, %57 : vector<1x32xf32>
    %59 = vector.shape_cast %16 : vector<1x32xf32> to vector<1x1x32xf32>
    %60 = vector.shape_cast %22 : vector<1x32xf32> to vector<1x1x32xf32>
    %61 = vector.shape_cast %28 : vector<1x32xf32> to vector<1x1x32xf32>
    %62 = vector.shape_cast %34 : vector<1x32xf32> to vector<1x1x32xf32>
    %63 = vector.shape_cast %40 : vector<1x32xf32> to vector<1x1x32xf32>
    %64 = vector.shape_cast %46 : vector<1x32xf32> to vector<1x1x32xf32>
    %65 = vector.shape_cast %52 : vector<1x32xf32> to vector<1x1x32xf32>
    %66 = vector.shape_cast %58 : vector<1x32xf32> to vector<1x1x32xf32>
    %67 = tpu.concatenate %59, %60, %61, %62, %63, %64, %65, %66 in 1 : vector<1x1x32xf32>, vector<1x1x32xf32>, vector<1x1x32xf32>, vector<1x1x32xf32>, vector<1x1x32xf32>, vector<1x1x32xf32>, vector<1x1x32xf32>, vector<1x1x32xf32> -> vector<1x8x32xf32>
    %68 = vector.shape_cast %67 : vector<1x8x32xf32> to vector<8x32xf32>
    %cst_27 = arith.constant dense<0.000000e+00> : vector<8x128xf32>
    %69 = tpu.matmul %68, %10, %cst_27 {dimension_numbers = #tpu.dot_dimension_numbers<[1], [0], [0], [1], [0, 0, 1, 1], [], []>} : vector<8x32xf32>, vector<32x128xf32>, vector<8x128xf32> -> vector<8x128xf32>
    %70 = vector.shape_cast %69 : vector<8x128xf32> to vector<1x8x128xf32>
    %c0_28 = arith.constant 0 : index
    %c0_29 = arith.constant 0 : index
    %c0_30 = arith.constant 0 : index
    %71 = vector.load %arg6[%c0_28, %c0_29, %c0_30] : memref<1x8x128xf32, #tpu.memory_space<vmem>>, vector<1x8x128xf32>
    tpu.vector_store %arg6[%c0_28, %c0_29, %c0_30], %70 {strides = array<i32>} : memref<1x8x128xf32, #tpu.memory_space<vmem>>, vector<1x8x128xf32>,
    %c0_31 = arith.constant 0 : index
    %c0_32 = arith.constant 0 : index
    %72 = vector.load %arg7[%c0_31, %c0_32] : memref<1x32xf32, #tpu.memory_space<vmem>>, vector<1x32xf32>
    tpu.vector_store %arg7[%c0_31, %c0_32], %58 {strides = array<i32>} : memref<1x32xf32, #tpu.memory_space<vmem>>, vector<1x32xf32>,
    return
  }
  func.func @transform_0(%arg0: i32, %arg1: i32) -> (i32, i32, i32) {
    %c0_i32 = arith.constant 0 : i32
    %c0_i32_0 = arith.constant 0 : i32
    return %arg0, %arg1, %c0_i32 : i32, i32, i32
  }
  func.func @transform_1(%arg0: i32, %arg1: i32) -> (i32, i32) {
    %c0_i32 = arith.constant 0 : i32
    %c0_i32_0 = arith.constant 0 : i32
    %c0_i32_1 = arith.constant 0 : i32
    return %c0_i32, %c0_i32_0 : i32, i32
  }
  func.func @transform_2(%arg0: i32, %arg1: i32) -> (i32, i32) {
    %c0_i32 = arith.constant 0 : i32
    %c0_i32_0 = arith.constant 0 : i32
    %c0_i32_1 = arith.constant 0 : i32
    return %c0_i32, %c0_i32_0 : i32, i32
  }
  func.func @transform_3(%arg0: i32, %arg1: i32) -> (i32, i32) {
    %c0_i32 = arith.constant 0 : i32
    %c0_i32_0 = arith.constant 0 : i32
    %c0_i32_1 = arith.constant 0 : i32
    return %c0_i32, %c0_i32_0 : i32, i32
  }
  func.func @transform_4(%arg0: i32, %arg1: i32) -> (i32, i32, i32) {
    %c0_i32 = arith.constant 0 : i32
    %c0_i32_0 = arith.constant 0 : i32
    return %arg0, %arg1, %c0_i32 : i32, i32, i32
  }
}

</mosaic_0001>

<llo_original>
// kernel: tpu_custom_call.1
$region0: #{tpu_custom_call.1}
  #allocation0 [shape = 'u32[]', space=smem, size = 0x4, offset = 0x4, fixed_abs, tag = 'smem constant byte address 0x4 - core index']
  #allocation1 [shape = 'u32[144,128]{1,0:T(1,128)}', space=vmem, size = 0x12000, scoped, tag = 'internal scratch']
  #allocation2 [shape = 'f32[1,32]{1,0:T(1,128)}', space=vmem, size = 0x200, scoped, tag = 'scratch operand']
  %s0 = inlined_call_operand.vmem [shape: f32[2,8,4], index: 0, kind: input, shape index: {}]
  %s1 = inlined_call_operand.hbm [shape: f32[32,32], index: 1, kind: input, shape index: {}]
  %s2 = inlined_call_operand.hbm [shape: f32[4,32], index: 2, kind: input, shape index: {}]
  %s3 = inlined_call_operand.vmem [shape: f32[32,128], index: 3, kind: input, shape index: {}]
  %s4 = inlined_call_operand.hbm [shape: f32[2,8,128], index: 4, kind: output, shape index: {}]
  %s5 = sld [smem:[#allocation0]]
  $region61: #{tpu_custom_call.1} parent=0
    _
  %s7 = ssub.s32 1, %s5
  %s8 = scalar_select 0, %s7, %s5
  $region1: #{tpu_custom_call.1} parent=0
    #allocation3 [shape = 'u8[16384]{0}', space=vmem, size = 0x4000, scoped, tag = 'input window, operand 1, single buffered']
    #allocation4 [shape = 's32[2]{0}', space=sflag, size = 0x8, scoped, tag = 'scoped memory for tpu_custom_call.1']
    #allocation5 [shape = 's32[2]{0}', space=sflag, size = 0x8, scoped, tag = 'scoped memory for tpu_custom_call.1']
    #allocation6 [shape = 'u8[2048]{0}', space=vmem, size = 0x800, scoped, tag = 'input window, operand 2, single buffered']
    #allocation7 [shape = 's32[1]{0}', space=sflag, size = 0x4, scoped, tag = 'scoped memory for tpu_custom_call.1']
    #allocation8 [shape = 'u8[8192]{0}', space=vmem, size = 0x2000, scoped, tag = 'output window, operand 0']
    %9 = vsyncpa [#allocation4], 0
    %10 = vsyncpa [#allocation7], 0
    %11 = vsyncpa [#allocation5], 0
    %s12 = scalar_lea.sflag [#allocation5], 1
    %13 = vsyncpa %s12, 0
    loop: start=0, step=1, limit=4
    $region2: #{tpu_custom_call.1} parent=1 // loop_pre_header
      _
    $region3: #{tpu_custom_call.1} parent=1 // loop_header
      %s15 = sphi 0, %s19
      %p16 = scmp.ge.s32.totalorder %s15, 4
      %s22 = sphi 0, %s34
      %s23 = sphi 0, %s30
      %s24 = sphi 0, %s22
      %s25 = sphi 0, %s23
      %s26 = sphi 0, %s24
      %s27 = sphi 0, %s25
      %s39 = sphi 0, %s41
      %s42 = sphi 0, %s39
      %s43 = sphi 0, %s42
      %s59 = sphi 0, %s43
      %s63 = sphi 0, %s63
      %s65 = sphi 0, %s63
      %s66 = sphi 0, %s65
      %s80 = sphi 0, %s66
      %s84 = sphi 0, %s84
      %s86 = sphi 0, %s84
      %s87 = sphi 0, %s86
      %s101 = sphi 0, %s87
      %s105 = sphi 0, %s105
      %s107 = sphi 0, %s105
      %s108 = sphi 0, %s107
      %s122 = sphi 0, %s108
      %s130 = sphi 0, %s132
      %s133 = sphi 0, %s130
      %s134 = sphi 0, %s133
      %s150 = sphi 0, %s134
    $region4: #{tpu_custom_call.1} parent=1 // loop_header_branch
      %18 = sbr.rel (%p16) target = $region8
    $region5: #{tpu_custom_call.1} parent=1 // loop_body
      %s20 = ssub.s32 %s15, 1
      %s21 = ssub.s32 %s15, 2
      %s28 = sadd.s32 1, %s23
      %p29 = scmp.ge.s32.totalorder %s28, 1
      %s30 = scalar_select %p29, 0, %s28
      %s31 = sadd.s32 1, %s22
      %s32 = scalar_select %p29, %s31, %s22
      %p33 = scmp.ge.s32.totalorder %s32, 2
      %s34 = scalar_select %p33, 0, %s32
      %s35 = ssub.s32 %s22, %s34
      %s36 = ssub.s32 %s23, %s30
      %s37 = sor.u32 %s35, %s36
      %p38 = scmp.eq.s32.totalorder %s37, 0
      %s40 = sadd.s32 %s39, 1
      %s41 = scalar_select %p38, %s39, %s40
      %p44 = pneg %p38
      %p45 = scmp.eq.s32.totalorder %s15, 1
      %p46 = por %p44, %p45
      %p47 = scmp.ne.s32.totalorder %s39, %s42
      %p48 = scmp.eq.s32.totalorder %s15, 0
      %p49 = por %p47, %p48
      %p50 = scmp.ne.s32.totalorder %s39, %s42
      %p51 = scmp.eq.s32.totalorder %s20, 1
      %p52 = por %p50, %p51
      %p53 = scmp.ne.s32.totalorder %s42, %s43
      %p54 = scmp.eq.s32.totalorder %s20, 0
      %p55 = por %p53, %p54
      %p56 = scmp.ne.s32.totalorder %s42, %s43
      %p57 = scmp.eq.s32.totalorder %s21, 1
      %p58 = por %p56, %p57
      %p60 = scmp.ne.s32.totalorder %s43, %s59
      %p61 = scmp.eq.s32.totalorder %s21, 0
      %p62 = por %p60, %p61
      %s64 = sadd.s32 %s63, 1
      %p67 = scmp.eq.s32.totalorder %s15, 1
      %p68 = scmp.ne.s32.totalorder %s63, %s65
      %p69 = scmp.eq.s32.totalorder %s15, 0
      %p70 = por %p68, %p69
      %p71 = scmp.ne.s32.totalorder %s63, %s65
      %p72 = scmp.eq.s32.totalorder %s20, 1
      %p73 = por %p71, %p72
      %p74 = scmp.ne.s32.totalorder %s65, %s66
      %p75 = scmp.eq.s32.totalorder %s20, 0
      %p76 = por %p74, %p75
      %p77 = scmp.ne.s32.totalorder %s65, %s66
      %p78 = scmp.eq.s32.totalorder %s21, 1
      %p79 = por %p77, %p78
      %p81 = scmp.ne.s32.totalorder %s66, %s80
      %p82 = scmp.eq.s32.totalorder %s21, 0
      %p83 = por %p81, %p82
      %s85 = sadd.s32 %s84, 1
      %p88 = scmp.eq.s32.totalorder %s15, 1
      %p89 = scmp.ne.s32.totalorder %s84, %s86
      %p90 = scmp.eq.s32.totalorder %s15, 0
      %p91 = por %p89, %p90
      %p92 = scmp.ne.s32.totalorder %s84, %s86
      %p93 = scmp.eq.s32.totalorder %s20, 1
      %p94 = por %p92, %p93
      %p95 = scmp.ne.s32.totalorder %s86, %s87
      %p96 = scmp.eq.s32.totalorder %s20, 0
      %p97 = por %p95, %p96
      %p98 = scmp.ne.s32.totalorder %s86, %s87
      %p99 = scmp.eq.s32.totalorder %s21, 1
      %p100 = por %p98, %p99
      %p102 = scmp.ne.s32.totalorder %s87, %s101
      %p103 = scmp.eq.s32.totalorder %s21, 0
      %p104 = por %p102, %p103
      %s106 = sadd.s32 %s105, 1
      %p109 = scmp.eq.s32.totalorder %s15, 1
      %p110 = scmp.ne.s32.totalorder %s105, %s107
      %p111 = scmp.eq.s32.totalorder %s15, 0
      %p112 = por %p110, %p111
      %p113 = scmp.ne.s32.totalorder %s105, %s107
      %p114 = scmp.eq.s32.totalorder %s20, 1
      %p115 = por %p113, %p114
      %p116 = scmp.ne.s32.totalorder %s107, %s108
      %p117 = scmp.eq.s32.totalorder %s20, 0
      %p118 = por %p116, %p117
      %p119 = scmp.ne.s32.totalorder %s107, %s108
      %p120 = scmp.eq.s32.totalorder %s21, 1
      %p121 = por %p119, %p120
      %p123 = scmp.ne.s32.totalorder %s108, %s122
      %p124 = scmp.eq.s32.totalorder %s21, 0
      %p125 = por %p123, %p124
      %s126 = ssub.s32 %s22, %s34
      %s127 = ssub.s32 %s23, %s30
      %s128 = sor.u32 %s126, %s127
      %p129 = scmp.eq.s32.totalorder %s128, 0
      %s131 = sadd.s32 %s130, 1
      %s132 = scalar_select %p129, %s130, %s131
      %p135 = pneg %p129
      %p136 = scmp.eq.s32.totalorder %s15, 1
      %p137 = por %p135, %p136
      %p138 = scmp.ne.s32.totalorder %s130, %s133
      %p139 = scmp.eq.s32.totalorder %s15, 0
      %p140 = por %p138, %p139
      %p141 = scmp.ne.s32.totalorder %s130, %s133
      %p142 = scmp.eq.s32.totalorder %s20, 1
      %p143 = por %p141, %p142
      %p144 = scmp.ne.s32.totalorder %s133, %s134
      %p145 = scmp.eq.s32.totalorder %s20, 0
      %p146 = por %p144, %p145
      %p147 = scmp.ne.s32.totalorder %s133, %s134
      %p148 = scmp.eq.s32.totalorder %s21, 1
      %p149 = por %p147, %p148
      %p151 = scmp.ne.s32.totalorder %s134, %s150
      %p152 = scmp.eq.s32.totalorder %s21, 0
      %p153 = por %p151, %p152
      %p154 = scmp.le.s32.totalorder 1, %s15
      %p155 = scmp.lt.s32.totalorder %s15, 3
      %p156 = pnand %p154, %p155
      %p157 = pneg %p156
      // Predicated region
      $region9: #{tpu_custom_call.1} parent=5 // pred_check
        _
      $region10: #{tpu_custom_call.1} parent=5 // pred_check_branch
        %159 = sbr.rel (%p156) target = $region12
      $region11: #{tpu_custom_call.1} parent=5 // pred_region
        %s160 = ssub.s32 %s15, 1
        // Predicated region
        $region13: #{tpu_custom_call.1} parent=11 // pred_check
          %p161 = pneg %p76
        $region14: #{tpu_custom_call.1} parent=11 // pred_check_branch
          %163 = sbr.rel (%p161) target = $region16
        $region15: #{tpu_custom_call.1} parent=11 // pred_region
          %s165 = ssub.s32 512, 512
          %166 = vsyncadd [#allocation4], %s165
          %s167 = sshll.u32 [#allocation3], 4
          %s168 = int_to_ptr.vmem [resolvable:$true] %s167
          %173 = dma.hbm_to_vmem [thread:$0]  %s1, 512, %s168, [#allocation4], 128, 128, 8
        $region16: #{tpu_custom_call.1} parent=11 // pred_fallthru
          _
        // Predicated region
        $region17: #{tpu_custom_call.1} parent=11 // pred_check
          %p174 = pneg %p97
        $region18: #{tpu_custom_call.1} parent=11 // pred_check_branch
          %176 = sbr.rel (%p174) target = $region20
        $region19: #{tpu_custom_call.1} parent=11 // pred_region
          %s178 = ssub.s32 64, 64
          %179 = vsyncadd [#allocation7], %s178
          %s181 = sshll.u32 [#allocation6], 4
          %s182 = int_to_ptr.vmem [resolvable:$true] %s181
          %184 = dma.hbm_to_vmem [thread:$0]  %s2, 64, %s182, [#allocation7]
        $region20: #{tpu_custom_call.1} parent=11 // pred_fallthru
          _
        // Predicated region
        $region21: #{tpu_custom_call.1} parent=11 // pred_check
          %p185 = pneg %p118
        $region22: #{tpu_custom_call.1} parent=11 // pred_check_branch
          %187 = sbr.rel (%p185) target = $region24
        $region23: #{tpu_custom_call.1} parent=11 // pred_region
          _
        $region24: #{tpu_custom_call.1} parent=11 // pred_fallthru
          _
      $region12: #{tpu_custom_call.1} parent=5 // pred_fallthru
        _
      %p188 = scmp.lt.s32.totalorder %s15, 2
      // Predicated region
      $region25: #{tpu_custom_call.1} parent=5 // pred_check
        %p189 = pneg %p188
      $region26: #{tpu_custom_call.1} parent=5 // pred_check_branch
        %191 = sbr.rel (%p189) target = $region28
      $region27: #{tpu_custom_call.1} parent=5 // pred_region
        // Predicated region
        $region29: #{tpu_custom_call.1} parent=27 // pred_check
          %p192 = pneg %p49
        $region30: #{tpu_custom_call.1} parent=27 // pred_check_branch
          %194 = sbr.rel (%p192) target = $region32
        $region31: #{tpu_custom_call.1} parent=27 // pred_region
          %p195 = scmp.lt.s32.totalorder %s22, 1
          %s196 = scalar_select %p195, %s22, 1
          %p197 = scmp.lt.s32.totalorder %s23, 0
          %s198 = scalar_select %p197, %s23, 0
          %s199 = sadd.s32 %s198, %s196
          %s200 = smul.addr %s199, 8
          %s201 = scalar_lea.vmem %s0, %s200
        $region32: #{tpu_custom_call.1} parent=27 // pred_fallthru
          _
      $region28: #{tpu_custom_call.1} parent=5 // pred_fallthru
        _
      %p202 = scmp.le.s32.totalorder 1, %s15
      %p203 = scmp.lt.s32.totalorder %s15, 3
      %p204 = pnand %p202, %p203
      %p205 = pneg %p204
      // Predicated region
      $region33: #{tpu_custom_call.1} parent=5 // pred_check
        _
      $region34: #{tpu_custom_call.1} parent=5 // pred_check_branch
        %207 = sbr.rel (%p204) target = $region36
      $region35: #{tpu_custom_call.1} parent=5 // pred_region
        %s208 = ssub.s32 %s15, 1
        // Predicated region
        $region37: #{tpu_custom_call.1} parent=35 // pred_check
          %p209 = pneg %p76
        $region38: #{tpu_custom_call.1} parent=35 // pred_check_branch
          %211 = sbr.rel (%p209) target = $region40
        $region39: #{tpu_custom_call.1} parent=35 // pred_region
          %212 = dma.done [#allocation4], 512
        $region40: #{tpu_custom_call.1} parent=35 // pred_fallthru
          _
        // Predicated region
        $region41: #{tpu_custom_call.1} parent=35 // pred_check
          %p213 = pneg %p97
        $region42: #{tpu_custom_call.1} parent=35 // pred_check_branch
          %215 = sbr.rel (%p213) target = $region44
        $region43: #{tpu_custom_call.1} parent=35 // pred_region
          %216 = dma.done [#allocation7], 64
        $region44: #{tpu_custom_call.1} parent=35 // pred_fallthru
          _
        %p217 = scmp.lt.s32.totalorder %s24, 1
        %s218 = scalar_select %p217, %s24, 1
        %p219 = scmp.lt.s32.totalorder %s25, 0
        %s220 = scalar_select %p219, %s25, 0
        %s221 = sadd.s32 %s220, %s218
        %s222 = smul.addr %s221, 8
        %s223 = scalar_lea.vmem %s0, %s222
        %p224 = pneg %p55
        %p225 = pneg %p52
        %p226 = pneg %p76
        %p227 = pneg %p73
        %p228 = pneg %p97
        %p229 = pneg %p94
        %p230 = pneg %p118
        %p231 = pneg %p115
        %p232 = pneg %p146
        %p233 = pneg %p143
        %s234 = sand.u32 %s133, 1
        %s235 = scalar_lea.sflag [#allocation5], %s234
        %s236 = sand.u32 %s133, 1
        %s237 = smul.addr %s236, 8
        %s238 = scalar_lea.vmem [#allocation8], %s237
        %p239 = scmp.lt.s32.totalorder %s24, 1
        %s240 = scalar_select %p239, %s24, 1
        %p241 = scmp.lt.s32.totalorder %s25, 0
        %s242 = scalar_select %p241, %s25, 0
        %s243 = sadd.s32 %s242, %s240
        %s244 = smul.addr %s243, 8
        %s245 = scalar_lea.vmem %s0, %s244
        %p246 = scmp.eq.s32.totalorder %s25, 0
        // Predicated region
        $region45: #{tpu_custom_call.1} parent=35 // pred_check
          %p247 = pneg %p246
        $region46: #{tpu_custom_call.1} parent=35 // pred_check_branch
          %249 = sbr.rel (%p247) target = $region48
        $region47: #{tpu_custom_call.1} parent=35 // pred_region
          %vm250 = vcmask 253952
          %251 = vst.msk [vmem:[#allocation2] sm:$0x1] %vm250, 0.0
        $region48: #{tpu_custom_call.1} parent=35 // pred_fallthru
          _
        %v252 = vld [vmem:[#allocation2] sm:$0x1]
        %v253 = vld [vmem:[%s245] sm:$0xff]
        %v254 = vld [vmem:[#allocation6] sm:$0xf]
        %vm255 = vcmask 31744
        %v257 = vsel %vm255, %v253, 0
        %vm259 = vcmask 1043456
        %v261 = vsel %vm259, %v254, 0
        %263 = vmatprep.subr.mxu0 0.0
        %264 = vmatpush1.msra.mxu0 %v261
        %265 = vmatprep.subr.mxu0 0.0
        %266 = vmatpush1.msra.mxu0 0.0
        %267 = vmatprep.subr.mxu0 0.0
        %268 = vmatpush1.msra.mxu0 0.0
        %269 = vmatprep.subr.mxu0 0.0
        %270 = vmatpush1.msra.mxu0 0.0
        %271 = vmatprep.subr.mxu0 0.0
        %272 = vmatpush1.msra.mxu0 0.0
        %273 = vmatprep.subr.mxu0 0.0
        %274 = vmatpush1.msra.mxu0 0.0
        %275 = vmatprep.subr.mxu0 0.0
        %276 = vmatpush1.msra.mxu0 0.0
        %277 = vmatprep.subr.mxu0 0.0
        %278 = vmatpush1.msra.mxu0 0.0
        %279 = vmatprep.subr.mxu0 0.0
        %280 = vmatpush1.msra.mxu0 0.0
        %281 = vmatprep.subr.mxu0 0.0
        %282 = vmatpush1.msra.mxu0 0.0
        %283 = vmatprep.subr.mxu0 0.0
        %284 = vmatpush1.msra.mxu0 0.0
        %285 = vmatprep.subr.mxu0 0.0
        %286 = vmatpush1.msra.mxu0 0.0
        %287 = vmatprep.subr.mxu0 0.0
        %288 = vmatpush1.msra.mxu0 0.0
        %289 = vmatprep.subr.mxu0 0.0
        %290 = vmatpush1.msra.mxu0 0.0
        %291 = vmatprep.subr.mxu0 0.0
        %292 = vmatpush1.msra.mxu0 0.0
        %293 = vmatprep.subr.mxu0 0.0
        %294 = vmatpush1.msra.mxu0 0.0
        %295 = vmatprep.subr.mxu0 0.0
        %296 = vmatpush1.msra.mxu0 0.0
        %297 = vmatprep.subr.mxu0 0.0
        %298 = vmatpush1.msra.mxu0 0.0
        %299 = vmatprep.subr.mxu0 0.0
        %300 = vmatpush1.msra.mxu0 0.0
        %301 = vmatprep.subr.mxu0 0.0
        %302 = vmatpush1.msra.mxu0 0.0
        %303 = vmatprep.subr.mxu0 0.0
        %304 = vmatpush1.msra.mxu0 0.0
        %305 = vmatprep.subr.mxu0 0.0
        %306 = vmatpush1.msra.mxu0 0.0
        %307 = vmatprep.subr.mxu0 0.0
        %308 = vmatpush1.msra.mxu0 0.0
        %309 = vmatprep.subr.mxu0 0.0
        %310 = vmatpush1.msra.mxu0 0.0
        %311 = vmatprep.subr.mxu0 0.0
        %312 = vmatpush1.msra.mxu0 0.0
        %313 = vmatprep.subr.mxu0 0.0
        %314 = vmatpush1.msra.mxu0 0.0
        %315 = vmatprep.subr.mxu0 0.0
        %316 = vmatpush1.msra.mxu0 0.0
        %317 = vmatprep.subr.mxu0 0.0
        %318 = vmatpush1.msra.mxu0 0.0
        %319 = vmatprep.subr.mxu0 0.0
        %320 = vmatpush1.msra.mxu0 0.0
        %321 = vmatprep.subr.mxu0 0.0
        %322 = vmatpush1.msra.mxu0 0.0
        %323 = vmatprep.subr.mxu0 0.0
        %324 = vmatpush1.msra.mxu0 0.0
        %325 = vmatprep.subr.mxu0 0.0
        %326 = vmatpush1.msra.mxu0 0.0
        %327 = vmatprep.mubr.f32.mxu0 0.0
        %328 = vmatmul.mubr.f32.gmra.mrb[0].mxu0 %v257
        %v329 = vpop.f32.mrb[0].mxu0
        %v330 = vadd.f32 0.0, %v329
        %v331 = vpop.f32.mrb[0].mxu0
        %332 = vdwg.mxu0
        %v333 = vld [vmem:[#allocation3] sm:$0xff]
        %v334 = vld [vmem:[#allocation3 + $0x8] sm:$0xff]
        %v335 = vld [vmem:[#allocation3 + $0x10] sm:$0xff]
        %v336 = vld [vmem:[#allocation3 + $0x18] sm:$0xff]
        %v337 = vld [vmem:[%s3] sm:$0xff]
        %v338 = vld [vmem:[%s3 + $0x8] sm:$0xff]
        %v339 = vld [vmem:[%s3 + $0x10] sm:$0xff]
        %v340 = vld [vmem:[%s3 + $0x18] sm:$0xff]
        %vm341 = vcmask 261120
        %v343 = vsel %vm341, %v252, 0
        %345 = vmatprep.subr.mxu0 0.0
        %346 = vmatpush1.msra.mxu0 %v333
        %347 = vmatprep.subr.mxu0 0.0
        %348 = vmatpush1.msra.mxu0 %v334
        %349 = vmatprep.subr.mxu0 0.0
        %350 = vmatpush1.msra.mxu0 %v335
        %351 = vmatprep.subr.mxu0 0.0
        %352 = vmatpush1.msra.mxu0 %v336
        %353 = vmatprep.subr.mxu0 0.0
        %354 = vmatpush1.msra.mxu0 0.0
        %355 = vmatprep.subr.mxu0 0.0
        %356 = vmatpush1.msra.mxu0 0.0
        %357 = vmatprep.subr.mxu0 0.0
        %358 = vmatpush1.msra.mxu0 0.0
        %359 = vmatprep.subr.mxu0 0.0
        %360 = vmatpush1.msra.mxu0 0.0
        %361 = vmatprep.subr.mxu0 0.0
        %362 = vmatpush1.msra.mxu0 0.0
        %363 = vmatprep.subr.mxu0 0.0
        %364 = vmatpush1.msra.mxu0 0.0
        %365 = vmatprep.subr.mxu0 0.0
        %366 = vmatpush1.msra.mxu0 0.0
        %367 = vmatprep.subr.mxu0 0.0
        %368 = vmatpush1.msra.mxu0 0.0
        %369 = vmatprep.subr.mxu0 0.0
        %370 = vmatpush1.msra.mxu0 0.0
        %371 = vmatprep.subr.mxu0 0.0
        %372 = vmatpush1.msra.mxu0 0.0
        %373 = vmatprep.subr.mxu0 0.0
        %374 = vmatpush1.msra.mxu0 0.0
        %375 = vmatprep.subr.mxu0 0.0
        %376 = vmatpush1.msra.mxu0 0.0
        %377 = vmatprep.subr.mxu0 0.0
        %378 = vmatpush1.msra.mxu0 0.0
        %379 = vmatprep.subr.mxu0 0.0
        %380 = vmatpush1.msra.mxu0 0.0
        %381 = vmatprep.subr.mxu0 0.0
        %382 = vmatpush1.msra.mxu0 0.0
        %383 = vmatprep.subr.mxu0 0.0
        %384 = vmatpush1.msra.mxu0 0.0
        %385 = vmatprep.subr.mxu0 0.0
        %386 = vmatpush1.msra.mxu0 0.0
        %387 = vmatprep.subr.mxu0 0.0
        %388 = vmatpush1.msra.mxu0 0.0
        %389 = vmatprep.subr.mxu0 0.0
        %390 = vmatpush1.msra.mxu0 0.0
        %391 = vmatprep.subr.mxu0 0.0
        %392 = vmatpush1.msra.mxu0 0.0
        %393 = vmatprep.subr.mxu0 0.0
        %394 = vmatpush1.msra.mxu0 0.0
        %395 = vmatprep.subr.mxu0 0.0
        %396 = vmatpush1.msra.mxu0 0.0
        %397 = vmatprep.subr.mxu0 0.0
        %398 = vmatpush1.msra.mxu0 0.0
        %399 = vmatprep.subr.mxu0 0.0
        %400 = vmatpush1.msra.mxu0 0.0
        %401 = vmatprep.subr.mxu0 0.0
        %402 = vmatpush1.msra.mxu0 0.0
        %403 = vmatprep.subr.mxu0 0.0
        %404 = vmatpush1.msra.mxu0 0.0
        %405 = vmatprep.subr.mxu0 0.0
        %406 = vmatpush1.msra.mxu0 0.0
        %407 = vmatprep.subr.mxu0 0.0
        %408 = vmatpush1.msra.mxu0 0.0
        %409 = vmatprep.mubr.f32.mxu0 0.0
        %410 = vmatmul.mubr.f32.gmra.mrb[0].mxu0 %v343
        %v411 = vpop.f32.mrb[0].mxu0
        %v412 = vadd.f32 %v330, %v411
        %v413 = vpop.f32.mrb[0].mxu0
        %414 = vdwg.mxu0
        %v415 = vmax.f32 %v412, 0.0
        %v417 = vrot.slane %v330, 1
        %v420 = vsel %vm341, %v415, 0
        %422 = vmatprep.subr.mxu0 0.0
        %423 = vmatpush1.msra.mxu0 %v333
        %424 = vmatprep.subr.mxu0 0.0
        %425 = vmatpush1.msra.mxu0 %v334
        %426 = vmatprep.subr.mxu0 0.0
        %427 = vmatpush1.msra.mxu0 %v335
        %428 = vmatprep.subr.mxu0 0.0
        %429 = vmatpush1.msra.mxu0 %v336
        %430 = vmatprep.subr.mxu0 0.0
        %431 = vmatpush1.msra.mxu0 0.0
        %432 = vmatprep.subr.mxu0 0.0
        %433 = vmatpush1.msra.mxu0 0.0
        %434 = vmatprep.subr.mxu0 0.0
        %435 = vmatpush1.msra.mxu0 0.0
        %436 = vmatprep.subr.mxu0 0.0
        %437 = vmatpush1.msra.mxu0 0.0
        %438 = vmatprep.subr.mxu0 0.0
        %439 = vmatpush1.msra.mxu0 0.0
        %440 = vmatprep.subr.mxu0 0.0
        %441 = vmatpush1.msra.mxu0 0.0
        %442 = vmatprep.subr.mxu0 0.0
        %443 = vmatpush1.msra.mxu0 0.0
        %444 = vmatprep.subr.mxu0 0.0
        %445 = vmatpush1.msra.mxu0 0.0
        %446 = vmatprep.subr.mxu0 0.0
        %447 = vmatpush1.msra.mxu0 0.0
        %448 = vmatprep.subr.mxu0 0.0
        %449 = vmatpush1.msra.mxu0 0.0
        %450 = vmatprep.subr.mxu0 0.0
        %451 = vmatpush1.msra.mxu0 0.0
        %452 = vmatprep.subr.mxu0 0.0
        %453 = vmatpush1.msra.mxu0 0.0
        %454 = vmatprep.subr.mxu0 0.0
        %455 = vmatpush1.msra.mxu0 0.0
        %456 = vmatprep.subr.mxu0 0.0
        %457 = vmatpush1.msra.mxu0 0.0
        %458 = vmatprep.subr.mxu0 0.0
        %459 = vmatpush1.msra.mxu0 0.0
        %460 = vmatprep.subr.mxu0 0.0
        %461 = vmatpush1.msra.mxu0 0.0
        %462 = vmatprep.subr.mxu0 0.0
        %463 = vmatpush1.msra.mxu0 0.0
        %464 = vmatprep.subr.mxu0 0.0
        %465 = vmatpush1.msra.mxu0 0.0
        %466 = vmatprep.subr.mxu0 0.0
        %467 = vmatpush1.msra.mxu0 0.0
        %468 = vmatprep.subr.mxu0 0.0
        %469 = vmatpush1.msra.mxu0 0.0
        %470 = vmatprep.subr.mxu0 0.0
        %471 = vmatpush1.msra.mxu0 0.0
        %472 = vmatprep.subr.mxu0 0.0
        %473 = vmatpush1.msra.mxu0 0.0
        %474 = vmatprep.subr.mxu0 0.0
        %475 = vmatpush1.msra.mxu0 0.0
        %476 = vmatprep.subr.mxu0 0.0
        %477 = vmatpush1.msra.mxu0 0.0
        %478 = vmatprep.subr.mxu0 0.0
        %479 = vmatpush1.msra.mxu0 0.0
        %480 = vmatprep.subr.mxu0 0.0
        %481 = vmatpush1.msra.mxu0 0.0
        %482 = vmatprep.subr.mxu0 0.0
        %483 = vmatpush1.msra.mxu0 0.0
        %484 = vmatprep.subr.mxu0 0.0
        %485 = vmatpush1.msra.mxu0 0.0
        %486 = vmatprep.mubr.f32.mxu0 0.0
        %487 = vmatmul.mubr.f32.gmra.mrb[0].mxu0 %v420
        %v488 = vpop.f32.mrb[0].mxu0
        %v489 = vadd.f32 %v417, %v488
        %v490 = vpop.f32.mrb[0].mxu0
        %491 = vdwg.mxu0
        %v492 = vmax.f32 %v489, 0.0
        %v493 = vrot.slane %v330, 2
        %v496 = vsel %vm341, %v492, 0
        %498 = vmatprep.subr.mxu0 0.0
        %499 = vmatpush1.msra.mxu0 %v333
        %500 = vmatprep.subr.mxu0 0.0
        %501 = vmatpush1.msra.mxu0 %v334
        %502 = vmatprep.subr.mxu0 0.0
        %503 = vmatpush1.msra.mxu0 %v335
        %504 = vmatprep.subr.mxu0 0.0
        %505 = vmatpush1.msra.mxu0 %v336
        %506 = vmatprep.subr.mxu0 0.0
        %507 = vmatpush1.msra.mxu0 0.0
        %508 = vmatprep.subr.mxu0 0.0
        %509 = vmatpush1.msra.mxu0 0.0
        %510 = vmatprep.subr.mxu0 0.0
        %511 = vmatpush1.msra.mxu0 0.0
        %512 = vmatprep.subr.mxu0 0.0
        %513 = vmatpush1.msra.mxu0 0.0
        %514 = vmatprep.subr.mxu0 0.0
        %515 = vmatpush1.msra.mxu0 0.0
        %516 = vmatprep.subr.mxu0 0.0
        %517 = vmatpush1.msra.mxu0 0.0
        %518 = vmatprep.subr.mxu0 0.0
        %519 = vmatpush1.msra.mxu0 0.0
        %520 = vmatprep.subr.mxu0 0.0
        %521 = vmatpush1.msra.mxu0 0.0
        %522 = vmatprep.subr.mxu0 0.0
        %523 = vmatpush1.msra.mxu0 0.0
        %524 = vmatprep.subr.mxu0 0.0
        %525 = vmatpush1.msra.mxu0 0.0
        %526 = vmatprep.subr.mxu0 0.0
        %527 = vmatpush1.msra.mxu0 0.0
        %528 = vmatprep.subr.mxu0 0.0
        %529 = vmatpush1.msra.mxu0 0.0
        %530 = vmatprep.subr.mxu0 0.0
        %531 = vmatpush1.msra.mxu0 0.0
        %532 = vmatprep.subr.mxu0 0.0
        %533 = vmatpush1.msra.mxu0 0.0
        %534 = vmatprep.subr.mxu0 0.0
        %535 = vmatpush1.msra.mxu0 0.0
        %536 = vmatprep.subr.mxu0 0.0
        %537 = vmatpush1.msra.mxu0 0.0
        %538 = vmatprep.subr.mxu0 0.0
        %539 = vmatpush1.msra.mxu0 0.0
        %540 = vmatprep.subr.mxu0 0.0
        %541 = vmatpush1.msra.mxu0 0.0
        %542 = vmatprep.subr.mxu0 0.0
        %543 = vmatpush1.msra.mxu0 0.0
        %544 = vmatprep.subr.mxu0 0.0
        %545 = vmatpush1.msra.mxu0 0.0
        %546 = vmatprep.subr.mxu0 0.0
        %547 = vmatpush1.msra.mxu0 0.0
        %548 = vmatprep.subr.mxu0 0.0
        %549 = vmatpush1.msra.mxu0 0.0
        %550 = vmatprep.subr.mxu0 0.0
        %551 = vmatpush1.msra.mxu0 0.0
        %552 = vmatprep.subr.mxu0 0.0
        %553 = vmatpush1.msra.mxu0 0.0
        %554 = vmatprep.subr.mxu0 0.0
        %555 = vmatpush1.msra.mxu0 0.0
        %556 = vmatprep.subr.mxu0 0.0
        %557 = vmatpush1.msra.mxu0 0.0
        %558 = vmatprep.subr.mxu0 0.0
        %559 = vmatpush1.msra.mxu0 0.0
        %560 = vmatprep.subr.mxu0 0.0
        %561 = vmatpush1.msra.mxu0 0.0
        %562 = vmatprep.mubr.f32.mxu0 0.0
        %563 = vmatmul.mubr.f32.gmra.mrb[0].mxu0 %v496
        %v564 = vpop.f32.mrb[0].mxu0
        %v565 = vadd.f32 %v493, %v564
        %v566 = vpop.f32.mrb[0].mxu0
        %567 = vdwg.mxu0
        %v568 = vmax.f32 %v565, 0.0
        %v569 = vrot.slane %v330, 3
        %v572 = vsel %vm341, %v568, 0
        %574 = vmatprep.subr.mxu0 0.0
        %575 = vmatpush1.msra.mxu0 %v333
        %576 = vmatprep.subr.mxu0 0.0
        %577 = vmatpush1.msra.mxu0 %v334
        %578 = vmatprep.subr.mxu0 0.0
        %579 = vmatpush1.msra.mxu0 %v335
        %580 = vmatprep.subr.mxu0 0.0
        %581 = vmatpush1.msra.mxu0 %v336
        %582 = vmatprep.subr.mxu0 0.0
        %583 = vmatpush1.msra.mxu0 0.0
        %584 = vmatprep.subr.mxu0 0.0
        %585 = vmatpush1.msra.mxu0 0.0
        %586 = vmatprep.subr.mxu0 0.0
        %587 = vmatpush1.msra.mxu0 0.0
        %588 = vmatprep.subr.mxu0 0.0
        %589 = vmatpush1.msra.mxu0 0.0
        %590 = vmatprep.subr.mxu0 0.0
        %591 = vmatpush1.msra.mxu0 0.0
        %592 = vmatprep.subr.mxu0 0.0
        %593 = vmatpush1.msra.mxu0 0.0
        %594 = vmatprep.subr.mxu0 0.0
        %595 = vmatpush1.msra.mxu0 0.0
        %596 = vmatprep.subr.mxu0 0.0
        %597 = vmatpush1.msra.mxu0 0.0
        %598 = vmatprep.subr.mxu0 0.0
        %599 = vmatpush1.msra.mxu0 0.0
        %600 = vmatprep.subr.mxu0 0.0
        %601 = vmatpush1.msra.mxu0 0.0
        %602 = vmatprep.subr.mxu0 0.0
        %603 = vmatpush1.msra.mxu0 0.0
        %604 = vmatprep.subr.mxu0 0.0
        %605 = vmatpush1.msra.mxu0 0.0
        %606 = vmatprep.subr.mxu0 0.0
        %607 = vmatpush1.msra.mxu0 0.0
        %608 = vmatprep.subr.mxu0 0.0
        %609 = vmatpush1.msra.mxu0 0.0
        %610 = vmatprep.subr.mxu0 0.0
        %611 = vmatpush1.msra.mxu0 0.0
        %612 = vmatprep.subr.mxu0 0.0
        %613 = vmatpush1.msra.mxu0 0.0
        %614 = vmatprep.subr.mxu0 0.0
        %615 = vmatpush1.msra.mxu0 0.0
        %616 = vmatprep.subr.mxu0 0.0
        %617 = vmatpush1.msra.mxu0 0.0
        %618 = vmatprep.subr.mxu0 0.0
        %619 = vmatpush1.msra.mxu0 0.0
        %620 = vmatprep.subr.mxu0 0.0
        %621 = vmatpush1.msra.mxu0 0.0
        %622 = vmatprep.subr.mxu0 0.0
        %623 = vmatpush1.msra.mxu0 0.0
        %624 = vmatprep.subr.mxu0 0.0
        %625 = vmatpush1.msra.mxu0 0.0
        %626 = vmatprep.subr.mxu0 0.0
        %627 = vmatpush1.msra.mxu0 0.0
        %628 = vmatprep.subr.mxu0 0.0
        %629 = vmatpush1.msra.mxu0 0.0
        %630 = vmatprep.subr.mxu0 0.0
        %631 = vmatpush1.msra.mxu0 0.0
        %632 = vmatprep.subr.mxu0 0.0
        %633 = vmatpush1.msra.mxu0 0.0
        %634 = vmatprep.subr.mxu0 0.0
        %635 = vmatpush1.msra.mxu0 0.0
        %636 = vmatprep.subr.mxu0 0.0
        %637 = vmatpush1.msra.mxu0 0.0
        %638 = vmatprep.mubr.f32.mxu0 0.0
        %639 = vmatmul.mubr.f32.gmra.mrb[0].mxu0 %v572
        %v640 = vpop.f32.mrb[0].mxu0
        %v641 = vadd.f32 %v569, %v640
        %v642 = vpop.f32.mrb[0].mxu0
        %643 = vdwg.mxu0
        %v644 = vmax.f32 %v641, 0.0
        %v645 = vrot.slane %v330, 4
        %v648 = vsel %vm341, %v644, 0
        %650 = vmatprep.subr.mxu0 0.0
        %651 = vmatpush1.msra.mxu0 %v333
        %652 = vmatprep.subr.mxu0 0.0
        %653 = vmatpush1.msra.mxu0 %v334
        %654 = vmatprep.subr.mxu0 0.0
        %655 = vmatpush1.msra.mxu0 %v335
        %656 = vmatprep.subr.mxu0 0.0
        %657 = vmatpush1.msra.mxu0 %v336
        %658 = vmatprep.subr.mxu0 0.0
        %659 = vmatpush1.msra.mxu0 0.0
        %660 = vmatprep.subr.mxu0 0.0
        %661 = vmatpush1.msra.mxu0 0.0
        %662 = vmatprep.subr.mxu0 0.0
        %663 = vmatpush1.msra.mxu0 0.0
        %664 = vmatprep.subr.mxu0 0.0
        %665 = vmatpush1.msra.mxu0 0.0
        %666 = vmatprep.subr.mxu0 0.0
        %667 = vmatpush1.msra.mxu0 0.0
        %668 = vmatprep.subr.mxu0 0.0
        %669 = vmatpush1.msra.mxu0 0.0
        %670 = vmatprep.subr.mxu0 0.0
        %671 = vmatpush1.msra.mxu0 0.0
        %672 = vmatprep.subr.mxu0 0.0
        %673 = vmatpush1.msra.mxu0 0.0
        %674 = vmatprep.subr.mxu0 0.0
        %675 = vmatpush1.msra.mxu0 0.0
        %676 = vmatprep.subr.mxu0 0.0
        %677 = vmatpush1.msra.mxu0 0.0
        %678 = vmatprep.subr.mxu0 0.0
        %679 = vmatpush1.msra.mxu0 0.0
        %680 = vmatprep.subr.mxu0 0.0
        %681 = vmatpush1.msra.mxu0 0.0
        %682 = vmatprep.subr.mxu0 0.0
        %683 = vmatpush1.msra.mxu0 0.0
        %684 = vmatprep.subr.mxu0 0.0
        %685 = vmatpush1.msra.mxu0 0.0
        %686 = vmatprep.subr.mxu0 0.0
        %687 = vmatpush1.msra.mxu0 0.0
        %688 = vmatprep.subr.mxu0 0.0
        %689 = vmatpush1.msra.mxu0 0.0
        %690 = vmatprep.subr.mxu0 0.0
        %691 = vmatpush1.msra.mxu0 0.0
        %692 = vmatprep.subr.mxu0 0.0
        %693 = vmatpush1.msra.mxu0 0.0
        %694 = vmatprep.subr.mxu0 0.0
        %695 = vmatpush1.msra.mxu0 0.0
        %696 = vmatprep.subr.mxu0 0.0
        %697 = vmatpush1.msra.mxu0 0.0
        %698 = vmatprep.subr.mxu0 0.0
        %699 = vmatpush1.msra.mxu0 0.0
        %700 = vmatprep.subr.mxu0 0.0
        %701 = vmatpush1.msra.mxu0 0.0
        %702 = vmatprep.subr.mxu0 0.0
        %703 = vmatpush1.msra.mxu0 0.0
        %704 = vmatprep.subr.mxu0 0.0
        %705 = vmatpush1.msra.mxu0 0.0
        %706 = vmatprep.subr.mxu0 0.0
        %707 = vmatpush1.msra.mxu0 0.0
        %708 = vmatprep.subr.mxu0 0.0
        %709 = vmatpush1.msra.mxu0 0.0
        %710 = vmatprep.subr.mxu0 0.0
        %711 = vmatpush1.msra.mxu0 0.0
        %712 = vmatprep.subr.mxu0 0.0
        %713 = vmatpush1.msra.mxu0 0.0
        %714 = vmatprep.mubr.f32.mxu0 0.0
        %715 = vmatmul.mubr.f32.gmra.mrb[0].mxu0 %v648
        %v716 = vpop.f32.mrb[0].mxu0
        %v717 = vadd.f32 %v645, %v716
        %v718 = vpop.f32.mrb[0].mxu0
        %719 = vdwg.mxu0
        %v720 = vmax.f32 %v717, 0.0
        %v721 = vrot.slane %v330, 5
        %v724 = vsel %vm341, %v720, 0
        %726 = vmatprep.subr.mxu0 0.0
        %727 = vmatpush1.msra.mxu0 %v333
        %728 = vmatprep.subr.mxu0 0.0
        %729 = vmatpush1.msra.mxu0 %v334
        %730 = vmatprep.subr.mxu0 0.0
        %731 = vmatpush1.msra.mxu0 %v335
        %732 = vmatprep.subr.mxu0 0.0
        %733 = vmatpush1.msra.mxu0 %v336
        %734 = vmatprep.subr.mxu0 0.0
        %735 = vmatpush1.msra.mxu0 0.0
        %736 = vmatprep.subr.mxu0 0.0
        %737 = vmatpush1.msra.mxu0 0.0
        %738 = vmatprep.subr.mxu0 0.0
        %739 = vmatpush1.msra.mxu0 0.0
        %740 = vmatprep.subr.mxu0 0.0
        %741 = vmatpush1.msra.mxu0 0.0
        %742 = vmatprep.subr.mxu0 0.0
        %743 = vmatpush1.msra.mxu0 0.0
        %744 = vmatprep.subr.mxu0 0.0
        %745 = vmatpush1.msra.mxu0 0.0
        %746 = vmatprep.subr.mxu0 0.0
        %747 = vmatpush1.msra.mxu0 0.0
        %748 = vmatprep.subr.mxu0 0.0
        %749 = vmatpush1.msra.mxu0 0.0
        %750 = vmatprep.subr.mxu0 0.0
        %751 = vmatpush1.msra.mxu0 0.0
        %752 = vmatprep.subr.mxu0 0.0
        %753 = vmatpush1.msra.mxu0 0.0
        %754 = vmatprep.subr.mxu0 0.0
        %755 = vmatpush1.msra.mxu0 0.0
        %756 = vmatprep.subr.mxu0 0.0
        %757 = vmatpush1.msra.mxu0 0.0
        %758 = vmatprep.subr.mxu0 0.0
        %759 = vmatpush1.msra.mxu0 0.0
        %760 = vmatprep.subr.mxu0 0.0
        %761 = vmatpush1.msra.mxu0 0.0
        %762 = vmatprep.subr.mxu0 0.0
        %763 = vmatpush1.msra.mxu0 0.0
        %764 = vmatprep.subr.mxu0 0.0
        %765 = vmatpush1.msra.mxu0 0.0
        %766 = vmatprep.subr.mxu0 0.0
        %767 = vmatpush1.msra.mxu0 0.0
        %768 = vmatprep.subr.mxu0 0.0
        %769 = vmatpush1.msra.mxu0 0.0
        %770 = vmatprep.subr.mxu0 0.0
        %771 = vmatpush1.msra.mxu0 0.0
        %772 = vmatprep.subr.mxu0 0.0
        %773 = vmatpush1.msra.mxu0 0.0
        %774 = vmatprep.subr.mxu0 0.0
        %775 = vmatpush1.msra.mxu0 0.0
        %776 = vmatprep.subr.mxu0 0.0
        %777 = vmatpush1.msra.mxu0 0.0
        %778 = vmatprep.subr.mxu0 0.0
        %779 = vmatpush1.msra.mxu0 0.0
        %780 = vmatprep.subr.mxu0 0.0
        %781 = vmatpush1.msra.mxu0 0.0
        %782 = vmatprep.subr.mxu0 0.0
        %783 = vmatpush1.msra.mxu0 0.0
        %784 = vmatprep.subr.mxu0 0.0
        %785 = vmatpush1.msra.mxu0 0.0
        %786 = vmatprep.subr.mxu0 0.0
        %787 = vmatpush1.msra.mxu0 0.0
        %788 = vmatprep.subr.mxu0 0.0
        %789 = vmatpush1.msra.mxu0 0.0
        %790 = vmatprep.mubr.f32.mxu0 0.0
        %791 = vmatmul.mubr.f32.gmra.mrb[0].mxu0 %v724
        %v792 = vpop.f32.mrb[0].mxu0
        %v793 = vadd.f32 %v721, %v792
        %v794 = vpop.f32.mrb[0].mxu0
        %795 = vdwg.mxu0
        %v796 = vmax.f32 %v793, 0.0
        %v797 = vrot.slane %v330, 6
        %v800 = vsel %vm341, %v796, 0
        %802 = vmatprep.subr.mxu0 0.0
        %803 = vmatpush1.msra.mxu0 %v333
        %804 = vmatprep.subr.mxu0 0.0
        %805 = vmatpush1.msra.mxu0 %v334
        %806 = vmatprep.subr.mxu0 0.0
        %807 = vmatpush1.msra.mxu0 %v335
        %808 = vmatprep.subr.mxu0 0.0
        %809 = vmatpush1.msra.mxu0 %v336
        %810 = vmatprep.subr.mxu0 0.0
        %811 = vmatpush1.msra.mxu0 0.0
        %812 = vmatprep.subr.mxu0 0.0
        %813 = vmatpush1.msra.mxu0 0.0
        %814 = vmatprep.subr.mxu0 0.0
        %815 = vmatpush1.msra.mxu0 0.0
        %816 = vmatprep.subr.mxu0 0.0
        %817 = vmatpush1.msra.mxu0 0.0
        %818 = vmatprep.subr.mxu0 0.0
        %819 = vmatpush1.msra.mxu0 0.0
        %820 = vmatprep.subr.mxu0 0.0
        %821 = vmatpush1.msra.mxu0 0.0
        %822 = vmatprep.subr.mxu0 0.0
        %823 = vmatpush1.msra.mxu0 0.0
        %824 = vmatprep.subr.mxu0 0.0
        %825 = vmatpush1.msra.mxu0 0.0
        %826 = vmatprep.subr.mxu0 0.0
        %827 = vmatpush1.msra.mxu0 0.0
        %828 = vmatprep.subr.mxu0 0.0
        %829 = vmatpush1.msra.mxu0 0.0
        %830 = vmatprep.subr.mxu0 0.0
        %831 = vmatpush1.msra.mxu0 0.0
        %832 = vmatprep.subr.mxu0 0.0
        %833 = vmatpush1.msra.mxu0 0.0
        %834 = vmatprep.subr.mxu0 0.0
        %835 = vmatpush1.msra.mxu0 0.0
        %836 = vmatprep.subr.mxu0 0.0
        %837 = vmatpush1.msra.mxu0 0.0
        %838 = vmatprep.subr.mxu0 0.0
        %839 = vmatpush1.msra.mxu0 0.0
        %840 = vmatprep.subr.mxu0 0.0
        %841 = vmatpush1.msra.mxu0 0.0
        %842 = vmatprep.subr.mxu0 0.0
        %843 = vmatpush1.msra.mxu0 0.0
        %844 = vmatprep.subr.mxu0 0.0
        %845 = vmatpush1.msra.mxu0 0.0
        %846 = vmatprep.subr.mxu0 0.0
        %847 = vmatpush1.msra.mxu0 0.0
        %848 = vmatprep.subr.mxu0 0.0
        %849 = vmatpush1.msra.mxu0 0.0
        %850 = vmatprep.subr.mxu0 0.0
        %851 = vmatpush1.msra.mxu0 0.0
        %852 = vmatprep.subr.mxu0 0.0
        %853 = vmatpush1.msra.mxu0 0.0
        %854 = vmatprep.subr.mxu0 0.0
        %855 = vmatpush1.msra.mxu0 0.0
        %856 = vmatprep.subr.mxu0 0.0
        %857 = vmatpush1.msra.mxu0 0.0
        %858 = vmatprep.subr.mxu0 0.0
        %859 = vmatpush1.msra.mxu0 0.0
        %860 = vmatprep.subr.mxu0 0.0
        %861 = vmatpush1.msra.mxu0 0.0
        %862 = vmatprep.subr.mxu0 0.0
        %863 = vmatpush1.msra.mxu0 0.0
        %864 = vmatprep.subr.mxu0 0.0
        %865 = vmatpush1.msra.mxu0 0.0
        %866 = vmatprep.mubr.f32.mxu0 0.0
        %867 = vmatmul.mubr.f32.gmra.mrb[0].mxu0 %v800
        %v868 = vpop.f32.mrb[0].mxu0
        %v869 = vadd.f32 %v797, %v868
        %v870 = vpop.f32.mrb[0].mxu0
        %871 = vdwg.mxu0
        %v872 = vmax.f32 %v869, 0.0
        %v873 = vrot.slane %v330, 7
        %v876 = vsel %vm341, %v872, 0
        %878 = vmatprep.subr.mxu0 0.0
        %879 = vmatpush1.msra.mxu0 %v333
        %880 = vmatprep.subr.mxu0 0.0
        %881 = vmatpush1.msra.mxu0 %v334
        %882 = vmatprep.subr.mxu0 0.0
        %883 = vmatpush1.msra.mxu0 %v335
        %884 = vmatprep.subr.mxu0 0.0
        %885 = vmatpush1.msra.mxu0 %v336
        %886 = vmatprep.subr.mxu0 0.0
        %887 = vmatpush1.msra.mxu0 0.0
        %888 = vmatprep.subr.mxu0 0.0
        %889 = vmatpush1.msra.mxu0 0.0
        %890 = vmatprep.subr.mxu0 0.0
        %891 = vmatpush1.msra.mxu0 0.0
        %892 = vmatprep.subr.mxu0 0.0
        %893 = vmatpush1.msra.mxu0 0.0
        %894 = vmatprep.subr.mxu0 0.0
        %895 = vmatpush1.msra.mxu0 0.0
        %896 = vmatprep.subr.mxu0 0.0
        %897 = vmatpush1.msra.mxu0 0.0
        %898 = vmatprep.subr.mxu0 0.0
        %899 = vmatpush1.msra.mxu0 0.0
        %900 = vmatprep.subr.mxu0 0.0
        %901 = vmatpush1.msra.mxu0 0.0
        %902 = vmatprep.subr.mxu0 0.0
        %903 = vmatpush1.msra.mxu0 0.0
        %904 = vmatprep.subr.mxu0 0.0
        %905 = vmatpush1.msra.mxu0 0.0
        %906 = vmatprep.subr.mxu0 0.0
        %907 = vmatpush1.msra.mxu0 0.0
        %908 = vmatprep.subr.mxu0 0.0
        %909 = vmatpush1.msra.mxu0 0.0
        %910 = vmatprep.subr.mxu0 0.0
        %911 = vmatpush1.msra.mxu0 0.0
        %912 = vmatprep.subr.mxu0 0.0
        %913 = vmatpush1.msra.mxu0 0.0
        %914 = vmatprep.subr.mxu0 0.0
        %915 = vmatpush1.msra.mxu0 0.0
        %916 = vmatprep.subr.mxu0 0.0
        %917 = vmatpush1.msra.mxu0 0.0
        %918 = vmatprep.subr.mxu0 0.0
        %919 = vmatpush1.msra.mxu0 0.0
        %920 = vmatprep.subr.mxu0 0.0
        %921 = vmatpush1.msra.mxu0 0.0
        %922 = vmatprep.subr.mxu0 0.0
        %923 = vmatpush1.msra.mxu0 0.0
        %924 = vmatprep.subr.mxu0 0.0
        %925 = vmatpush1.msra.mxu0 0.0
        %926 = vmatprep.subr.mxu0 0.0
        %927 = vmatpush1.msra.mxu0 0.0
        %928 = vmatprep.subr.mxu0 0.0
        %929 = vmatpush1.msra.mxu0 0.0
        %930 = vmatprep.subr.mxu0 0.0
        %931 = vmatpush1.msra.mxu0 0.0
        %932 = vmatprep.subr.mxu0 0.0
        %933 = vmatpush1.msra.mxu0 0.0
        %934 = vmatprep.subr.mxu0 0.0
        %935 = vmatpush1.msra.mxu0 0.0
        %936 = vmatprep.subr.mxu0 0.0
        %937 = vmatpush1.msra.mxu0 0.0
        %938 = vmatprep.subr.mxu0 0.0
        %939 = vmatpush1.msra.mxu0 0.0
        %940 = vmatprep.subr.mxu0 0.0
        %941 = vmatpush1.msra.mxu0 0.0
        %942 = vmatprep.mubr.f32.mxu0 0.0
        %943 = vmatmul.mubr.f32.gmra.mrb[0].mxu0 %v876
        %v944 = vpop.f32.mrb[0].mxu0
        %v945 = vadd.f32 %v873, %v944
        %v946 = vpop.f32.mrb[0].mxu0
        %947 = vdwg.mxu0
        %v948 = vmax.f32 %v945, 0.0
        %v949 = vrot.slane %v492, 7
        %v951 = vrot.slane %v568, 6
        %v953 = vrot.slane %v644, 5
        %v955 = vrot.slane %v720, 4
        %v957 = vrot.slane %v796, 3
        %v959 = vrot.slane %v872, 2
        %v962 = vrot.slane %v948, 1
        %vm964 = vcmask 1040384
        %v965 = vsel %vm964, %v415, %v949
        %vm966 = vcmask 1041408
        %v967 = vsel %vm966, %v965, %v951
        %vm968 = vcmask 1042432
        %v969 = vsel %vm968, %v967, %v953
        %v970 = vsel %vm259, %v969, %v955
        %vm971 = vcmask 1044480
        %v972 = vsel %vm971, %v970, %v957
        %vm973 = vcmask 1045504
        %v974 = vsel %vm973, %v972, %v959
        %vm975 = vcmask 1046528
        %v976 = vsel %vm975, %v974, %v962
        %v978 = vsel %vm341, %v976, 0
        %980 = vmatprep.subr.mxu0 0.0
        %981 = vmatpush1.msra.mxu0 %v337
        %982 = vmatprep.subr.mxu0 0.0
        %983 = vmatpush1.msra.mxu0 %v338
        %984 = vmatprep.subr.mxu0 0.0
        %985 = vmatpush1.msra.mxu0 %v339
        %986 = vmatprep.subr.mxu0 0.0
        %987 = vmatpush1.msra.mxu0 %v340
        %988 = vmatprep.subr.mxu0 0.0
        %989 = vmatpush1.msra.mxu0 0.0
        %990 = vmatprep.subr.mxu0 0.0
        %991 = vmatpush1.msra.mxu0 0.0
        %992 = vmatprep.subr.mxu0 0.0
        %993 = vmatpush1.msra.mxu0 0.0
        %994 = vmatprep.subr.mxu0 0.0
        %995 = vmatpush1.msra.mxu0 0.0
        %996 = vmatprep.subr.mxu0 0.0
        %997 = vmatpush1.msra.mxu0 0.0
        %998 = vmatprep.subr.mxu0 0.0
        %999 = vmatpush1.msra.mxu0 0.0
        %1000 = vmatprep.subr.mxu0 0.0
        %1001 = vmatpush1.msra.mxu0 0.0
        %1002 = vmatprep.subr.mxu0 0.0
        %1003 = vmatpush1.msra.mxu0 0.0
        %1004 = vmatprep.subr.mxu0 0.0
        %1005 = vmatpush1.msra.mxu0 0.0
        %1006 = vmatprep.subr.mxu0 0.0
        %1007 = vmatpush1.msra.mxu0 0.0
        %1008 = vmatprep.subr.mxu0 0.0
        %1009 = vmatpush1.msra.mxu0 0.0
        %1010 = vmatprep.subr.mxu0 0.0
        %1011 = vmatpush1.msra.mxu0 0.0
        %1012 = vmatprep.subr.mxu0 0.0
        %1013 = vmatpush1.msra.mxu0 0.0
        %1014 = vmatprep.subr.mxu0 0.0
        %1015 = vmatpush1.msra.mxu0 0.0
        %1016 = vmatprep.subr.mxu0 0.0
        %1017 = vmatpush1.msra.mxu0 0.0
        %1018 = vmatprep.subr.mxu0 0.0
        %1019 = vmatpush1.msra.mxu0 0.0
        %1020 = vmatprep.subr.mxu0 0.0
        %1021 = vmatpush1.msra.mxu0 0.0
        %1022 = vmatprep.subr.mxu0 0.0
        %1023 = vmatpush1.msra.mxu0 0.0
        %1024 = vmatprep.subr.mxu0 0.0
        %1025 = vmatpush1.msra.mxu0 0.0
        %1026 = vmatprep.subr.mxu0 0.0
        %1027 = vmatpush1.msra.mxu0 0.0
        %1028 = vmatprep.subr.mxu0 0.0
        %1029 = vmatpush1.msra.mxu0 0.0
        %1030 = vmatprep.subr.mxu0 0.0
        %1031 = vmatpush1.msra.mxu0 0.0
        %1032 = vmatprep.subr.mxu0 0.0
        %1033 = vmatpush1.msra.mxu0 0.0
        %1034 = vmatprep.subr.mxu0 0.0
        %1035 = vmatpush1.msra.mxu0 0.0
        %1036 = vmatprep.subr.mxu0 0.0
        %1037 = vmatpush1.msra.mxu0 0.0
        %1038 = vmatprep.subr.mxu0 0.0
        %1039 = vmatpush1.msra.mxu0 0.0
        %1040 = vmatprep.subr.mxu0 0.0
        %1041 = vmatpush1.msra.mxu0 0.0
        %1042 = vmatprep.subr.mxu0 0.0
        %1043 = vmatpush1.msra.mxu0 0.0
        %1044 = vmatprep.mubr.f32.mxu0 0.0
        %1045 = vmatmul.mubr.f32.gmra.mrb[0].mxu0 %v978
        %v1046 = vpop.f32.mrb[0].mxu0
        %v1047 = vadd.f32 0.0, %v1046
        %v1048 = vpop.f32.mrb[0].mxu0
        %1049 = vdwg.mxu0
        %1050 = vst [vmem:[%s238] sm:$0xff] %v1047
        %vm1051 = vcmask 253952
        %1052 = vst.msk [vmem:[#allocation2] sm:$0x1] %vm1051, %v948
        %s1053 = sand.u32 %s133, 1
        %s1054 = scalar_lea.sflag [#allocation5], %s1053
        %s1055 = sand.u32 %s133, 1
        %s1056 = smul.addr %s1055, 8
        %s1057 = scalar_lea.vmem [#allocation8], %s1056
        // Predicated region
        $region49: #{tpu_custom_call.1} parent=35 // pred_check
          %p1058 = pneg %p143
        $region50: #{tpu_custom_call.1} parent=35 // pred_check_branch
          %1060 = sbr.rel (%p1058) target = $region52
        $region51: #{tpu_custom_call.1} parent=35 // pred_region
          %s1062 = ssub.s32 128, 128
          %1063 = vsyncadd %s1054, %s1062
          %s1064 = sadd.s32 %s25, %s24
          %s1065 = smul.addr %s1064, 128
          %s1066 = scalar_lea.hbm %s4, %s1065
          %s1068 = sshll.u32 %s1057, 4
          %s1069 = int_to_ptr.vmem [resolvable:$true] %s1068
          %1071 = dma.vmem_to_hbm [thread:$0]  %s1069, 128, %s1066, %s1054
        $region52: #{tpu_custom_call.1} parent=35 // pred_fallthru
          _
      $region36: #{tpu_custom_call.1} parent=5 // pred_fallthru
        _
      %p1072 = scmp.le.s32.totalorder 2, %s15
      // Predicated region
      $region53: #{tpu_custom_call.1} parent=5 // pred_check
        %p1073 = pneg %p1072
      $region54: #{tpu_custom_call.1} parent=5 // pred_check_branch
        %1075 = sbr.rel (%p1073) target = $region56
      $region55: #{tpu_custom_call.1} parent=5 // pred_region
        %s1076 = ssub.s32 %s15, 2
        // Predicated region
        $region57: #{tpu_custom_call.1} parent=55 // pred_check
          %p1077 = pneg %p149
        $region58: #{tpu_custom_call.1} parent=55 // pred_check_branch
          %1079 = sbr.rel (%p1077) target = $region60
        $region59: #{tpu_custom_call.1} parent=55 // pred_region
          %s1080 = sand.u32 %s134, 1
          %s1081 = scalar_lea.sflag [#allocation5], %s1080
          %s1082 = sand.u32 %s134, 1
          %s1083 = smul.addr %s1082, 8
          %s1084 = scalar_lea.vmem [#allocation8], %s1083
          %1085 = dma.done %s1081, 128
        $region60: #{tpu_custom_call.1} parent=55 // pred_fallthru
          _
      $region56: #{tpu_custom_call.1} parent=5 // pred_fallthru
        _
    $region6: #{tpu_custom_call.1} parent=1 // loop_footer
      %s19 = sadd.s32 1, %s15
    $region7: #{tpu_custom_call.1} parent=1 // loop_footer_branch
      %14 = sbr.rel target = $region3
    $region8: #{tpu_custom_call.1} parent=1 // loop_exit
      _
    %1086 = vsyncpa [#allocation4], 1
    %s1087 = scalar_lea.sflag [#allocation4], 1
    %1088 = vsyncpa %s1087, 1
    %1089 = vsyncpa [#allocation7], 1
    %1090 = vsyncpa [#allocation5], 1
    %s1091 = scalar_lea.sflag [#allocation5], 1
    %1092 = vsyncpa %s1091, 1

</llo_original>
